<compile_context>
chip_gen: v5e
topology: v5e:2x2
jax: 0.10.0
libtpu: 0.0.40
codegen_flags: <defaults>
</compile_context>

<pallas_src>
import jax
import jax.numpy as jnp
from jax.experimental import pallas as pl
from jax.experimental.pallas import tpu as pltpu


def _grad_update0_kernel(alpha_ref, w_ref, x_ref, xpred_ref, xobs_ref, o_ref):
    """One (batch, spatial-tile) block.

    alpha_ref : SMEM (2,)    f32  -> [alphaAE, alphaObs]
    w_ref     : SMEM (C*C,)  f32  -> gradNet 1x1 conv weight, row-major (co, ci)
    x_ref, xpred_ref, xobs_ref, o_ref : VMEM (C, S_TILE, 128), native dtype
    """
    a_ae = alpha_ref[0]
    a_obs = alpha_ref[1]

    x = x_ref[...].astype(jnp.float32)
    xp = xpred_ref[...].astype(jnp.float32)
    xo = xobs_ref[...].astype(jnp.float32)

    # Compute_Grad, GradType == 0, algebraically simplified:
    #   (xpred - x) + (x - xobs) == xpred - xobs
    grad = a_ae * (xp - xo) + a_obs * (x - xo)          # (C, S_TILE, 128) f32

    # gradNet: bias-free 1x1 conv over channels == tiny channel mix.  C is
    # small, so unroll on the VPU over dense (S_TILE, 128) slabs (full-vreg
    # ops, unmasked stores); weights are SMEM scalars.
    C = grad.shape[0]
    for co in range(C):
        acc = w_ref[co * C] * grad[0]
        for ci in range(1, C):
            acc = acc + w_ref[co * C + ci] * grad[ci]
        o_ref[co] = acc.astype(o_ref.dtype)


def _pick_sublane_tile(S, C, itemsize, max_block_bytes):
    """Largest multiple-of-8 divisor of S whose (C, S_TILE, 128) block fits the
    per-array VMEM budget; fall back to full extent (always legal)."""
    for cand in (4096, 2048, 1024, 512, 256, 128, 64, 32, 16, 8):
        if S % cand == 0 and C * cand * 128 * itemsize <= max_block_bytes:
            return cand
    return S


def model_grad_update0_forward(x, xpred, xobs, mask, conv_w, alpha_ae, alpha_obs):
    """x, xpred, xobs, mask: (B, C, H, W). conv_w: (C, C) gradNet 1x1 weight.

    mask is accepted for API parity with the PyTorch forward but is unused by
    the GradType=0 branch.
    """
    del mask  # unused by GradType == 0
    B, C, H, W = x.shape
    HW = H * W
    HW_pad = ((HW + 127) // 128) * 128          # lane-dense last dim
    S = HW_pad // 128
    dtype = x.dtype
    itemsize = jnp.dtype(dtype).itemsize

    # Per-generation per-array block budget: 4 arrays x 2 pipeline buffers must
    # stay under the default scoped-VMEM limit (16 MiB on v5e, 32 MiB on
    # v6e/v7x) while keeping >= ~1 MiB per array per step.
    try:
        kind = jax.devices()[0].device_kind.lower()
    except Exception:  # pragma: no cover - defensive
        kind = ""
    max_block_bytes = (1 << 20) if "v5" in kind else (2 << 20)

    s_tile = _pick_sublane_tile(S, C, itemsize, max_block_bytes)
    n_t = S // s_tile

    def prep(a):
        a = a.reshape(B, C, HW)                 # free, contiguous reshape
        if HW_pad != HW:
            a = jnp.pad(a, ((0, 0), (0, 0), (0, HW_pad - HW)))
        return a.reshape(B, C, S, 128)

    x_r, xp_r, xo_r = prep(x), prep(xpred), prep(xobs)

    f32 = jnp.float32
    w_flat = jnp.asarray(conv_w, f32).reshape(C * C)
    alpha = jnp.stack([jnp.asarray(alpha_ae, f32).reshape(()),
                       jnp.asarray(alpha_obs, f32).reshape(())])

    data_spec = pl.BlockSpec((pl.Squeezed(), C, s_tile, 128),
                             lambda b, t: (b, 0, t, 0))
    smem_spec = pl.BlockSpec(memory_space=pltpu.MemorySpace.SMEM)

    out = pl.pallas_call(
        _grad_update0_kernel,
        out_shape=jax.ShapeDtypeStruct((B, C, S, 128), dtype),
        grid=(B, n_t),
        in_specs=[
            smem_spec,   # alpha (2,)
            smem_spec,   # conv weight (C*C,)
            data_spec,   # x
            data_spec,   # xpred
            data_spec,   # xobs
        ],
        out_specs=data_spec,
        compiler_params=pltpu.CompilerParams(
            dimension_semantics=("parallel", "parallel")),
    )(alpha, w_flat, x_r, xp_r, xo_r)

    out = out.reshape(B, C, HW_pad)
    if HW_pad != HW:
        out = out[:, :, :HW]                    # drop lane padding
    return out.reshape(B, C, H, W)


def _reference(x, xpred, xobs, mask, conv_w, alpha_ae, alpha_obs):
    """Pure-JAX mirror of the PyTorch module (GradType=0 + 1x1 conv gradNet)."""
    del mask
    grad = xpred - x
    grad2 = x - xobs
    grad = grad + grad2
    grad = alpha_ae * grad + alpha_obs * grad2
    return jnp.einsum("oc,bchw->bohw", conv_w, grad)


if __name__ == "__main__":
    key = jax.random.PRNGKey(0)
    k1, k2, k3, k4 = jax.random.split(key, 4)

    B, C, H, W = 2, 4, 16, 16
    x = jax.random.normal(k1, (B, C, H, W), dtype=jnp.float32)
    xpred = jax.random.normal(k2, (B, C, H, W), dtype=jnp.float32)
    xobs = jax.random.normal(k3, (B, C, H, W), dtype=jnp.float32)
    mask = (jax.random.uniform(k4, (B, C, H, W)) > 0.5).astype(jnp.float32)

    # Module parameters as initialized in PyTorch:
    alpha_ae = jnp.float32(1.0)    # Compute_Grad.alphaAE
    alpha_obs = jnp.float32(1.0)   # Compute_Grad.alphaObs
    # gradNet: Conv2d(C, C, (1,1), bias=False) whose weight the module sets to
    # the scalar 0.1 -> a per-channel gain of 0.1, i.e. 0.1 * I as a (C, C) mix.
    conv_w = 0.1 * jnp.eye(C, dtype=jnp.float32)

    out = model_grad_update0_forward(x, xpred, xobs, mask,
                                     conv_w, alpha_ae, alpha_obs)
    out = jax.block_until_ready(out)

    ref = _reference(x, xpred, xobs, mask, conv_w, alpha_ae, alpha_obs)
    assert out.shape == (B, C, H, W)
    assert jnp.allclose(out, ref, rtol=1e-5, atol=1e-5), (
        float(jnp.max(jnp.abs(out - ref))))

    print("KERNEL_OK")
</pallas_src>

<mosaic_0001>
module attributes {stable_mosaic.version = 11 : i64} {
  func.func @_grad_update0_kernel(%arg0: i32, %arg1: i32, %arg2: memref<2xf32, #tpu.memory_space<smem>>, %arg3: memref<16xf32, #tpu.memory_space<smem>>, %arg4: memref<1x4x2x128xf32, #tpu.memory_space<vmem>>, %arg5: memref<1x4x2x128xf32, #tpu.memory_space<vmem>>, %arg6: memref<1x4x2x128xf32, #tpu.memory_space<vmem>>, %arg7: memref<1x4x2x128xf32, #tpu.memory_space<vmem>>) attributes {dimension_semantics = [#tpu.dimension_semantics<parallel>, #tpu.dimension_semantics<parallel>], iteration_bounds = array<i64: 2, 1>, scalar_prefetch = 0 : i64, scratch_operands = 0 : i64, tpu.core_type = #tpu.core_type<tc>, window_params = [{transform_indices = @transform_0, window_bounds = array<i64: 2>}, {transform_indices = @transform_1, window_bounds = array<i64: 16>}, {transform_indices = @transform_2, window_bounds = array<i64: 1, 4, 2, 128>}, {transform_indices = @transform_3, window_bounds = array<i64: 1, 4, 2, 128>}, {transform_indices = @transform_4, window_bounds = array<i64: 1, 4, 2, 128>}, {transform_indices = @transform_5, window_bounds = array<i64: 1, 4, 2, 128>}]} {
    %c0 = arith.constant 0 : index
    %0 = memref.load %arg2[%c0] : memref<2xf32, #tpu.memory_space<smem>>
    %c1 = arith.constant 1 : index
    %1 = memref.load %arg2[%c1] : memref<2xf32, #tpu.memory_space<smem>>
    %c0_0 = arith.constant 0 : index
    %c0_1 = arith.constant 0 : index
    %c0_2 = arith.constant 0 : index
    %c0_3 = arith.constant 0 : index
    %2 = vector.load %arg4[%c0_0, %c0_1, %c0_2, %c0_3] : memref<1x4x2x128xf32, #tpu.memory_space<vmem>>, vector<1x4x2x128xf32>
    %3 = vector.shape_cast %2 : vector<1x4x2x128xf32> to vector<4x2x128xf32>
    %c0_4 = arith.constant 0 : index
    %c0_5 = arith.constant 0 : index
    %c0_6 = arith.constant 0 : index
    %c0_7 = arith.constant 0 : index
    %4 = vector.load %arg5[%c0_4, %c0_5, %c0_6, %c0_7] : memref<1x4x2x128xf32, #tpu.memory_space<vmem>>, vector<1x4x2x128xf32>
    %5 = vector.shape_cast %4 : vector<1x4x2x128xf32> to vector<4x2x128xf32>
    %c0_8 = arith.constant 0 : index
    %c0_9 = arith.constant 0 : index
    %c0_10 = arith.constant 0 : index
    %c0_11 = arith.constant 0 : index
    %6 = vector.load %arg6[%c0_8, %c0_9, %c0_10, %c0_11] : memref<1x4x2x128xf32, #tpu.memory_space<vmem>>, vector<1x4x2x128xf32>
    %7 = vector.shape_cast %6 : vector<1x4x2x128xf32> to vector<4x2x128xf32>
    %8 = arith.subf %5, %7 : vector<4x2x128xf32>
    %9 = vector.broadcast %0 : f32 to vector<4x2x128xf32>
    %10 = arith.mulf %9, %8 : vector<4x2x128xf32>
    %11 = arith.subf %3, %7 : vector<4x2x128xf32>
    %12 = vector.broadcast %1 : f32 to vector<4x2x128xf32>
    %13 = arith.mulf %12, %11 : vector<4x2x128xf32>
    %14 = arith.addf %10, %13 : vector<4x2x128xf32>
    %c0_12 = arith.constant 0 : index
    %15 = memref.load %arg3[%c0_12] : memref<16xf32, #tpu.memory_space<smem>>
    %16 = vector.extract_strided_slice %14 {offsets = [0, 0, 0], sizes = [1, 2, 128], strides = [1, 1, 1]} : vector<4x2x128xf32> to vector<1x2x128xf32>
    %17 = vector.shape_cast %16 : vector<1x2x128xf32> to vector<2x128xf32>
    %18 = vector.broadcast %15 : f32 to vector<2x128xf32>
    %19 = arith.mulf %18, %17 : vector<2x128xf32>
    %c1_13 = arith.constant 1 : index
    %20 = memref.load %arg3[%c1_13] : memref<16xf32, #tpu.memory_space<smem>>
    %21 = vector.extract_strided_slice %14 {offsets = [1, 0, 0], sizes = [1, 2, 128], strides = [1, 1, 1]} : vector<4x2x128xf32> to vector<1x2x128xf32>
    %22 = vector.shape_cast %21 : vector<1x2x128xf32> to vector<2x128xf32>
    %23 = vector.broadcast %20 : f32 to vector<2x128xf32>
    %24 = arith.mulf %23, %22 : vector<2x128xf32>
    %25 = arith.addf %19, %24 : vector<2x128xf32>
    %c2 = arith.constant 2 : index
    %26 = memref.load %arg3[%c2] : memref<16xf32, #tpu.memory_space<smem>>
    %27 = vector.extract_strided_slice %14 {offsets = [2, 0, 0], sizes = [1, 2, 128], strides = [1, 1, 1]} : vector<4x2x128xf32> to vector<1x2x128xf32>
    %28 = vector.shape_cast %27 : vector<1x2x128xf32> to vector<2x128xf32>
    %29 = vector.broadcast %26 : f32 to vector<2x128xf32>
    %30 = arith.mulf %29, %28 : vector<2x128xf32>
    %31 = arith.addf %25, %30 : vector<2x128xf32>
    %c3 = arith.constant 3 : index
    %32 = memref.load %arg3[%c3] : memref<16xf32, #tpu.memory_space<smem>>
    %33 = vector.extract_strided_slice %14 {offsets = [3, 0, 0], sizes = [1, 2, 128], strides = [1, 1, 1]} : vector<4x2x128xf32> to vector<1x2x128xf32>
    %34 = vector.shape_cast %33 : vector<1x2x128xf32> to vector<2x128xf32>
    %35 = vector.broadcast %32 : f32 to vector<2x128xf32>
    %36 = arith.mulf %35, %34 : vector<2x128xf32>
    %37 = arith.addf %31, %36 : vector<2x128xf32>
    %c0_14 = arith.constant 0 : index
    %c0_15 = arith.constant 0 : index
    %c0_16 = arith.constant 0 : index
    %c0_17 = arith.constant 0 : index
    %38 = vector.load %arg7[%c0_14, %c0_15, %c0_16, %c0_17] : memref<1x4x2x128xf32, #tpu.memory_space<vmem>>, vector<1x1x2x128xf32>
    %39 = vector.shape_cast %38 : vector<1x1x2x128xf32> to vector<2x128xf32>
    %40 = vector.shape_cast %37 : vector<2x128xf32> to vector<1x1x2x128xf32>
    tpu.vector_store %arg7[%c0_14, %c0_15, %c0_16, %c0_17], %40 {strides = array<i32>} : memref<1x4x2x128xf32, #tpu.memory_space<vmem>>, vector<1x1x2x128xf32>,
    %c4 = arith.constant 4 : index
    %41 = memref.load %arg3[%c4] : memref<16xf32, #tpu.memory_space<smem>>
    %42 = vector.extract_strided_slice %14 {offsets = [0, 0, 0], sizes = [1, 2, 128], strides = [1, 1, 1]} : vector<4x2x128xf32> to vector<1x2x128xf32>
    %43 = vector.shape_cast %42 : vector<1x2x128xf32> to vector<2x128xf32>
    %44 = vector.broadcast %41 : f32 to vector<2x128xf32>
    %45 = arith.mulf %44, %43 : vector<2x128xf32>
    %c5 = arith.constant 5 : index
    %46 = memref.load %arg3[%c5] : memref<16xf32, #tpu.memory_space<smem>>
    %47 = vector.extract_strided_slice %14 {offsets = [1, 0, 0], sizes = [1, 2, 128], strides = [1, 1, 1]} : vector<4x2x128xf32> to vector<1x2x128xf32>
    %48 = vector.shape_cast %47 : vector<1x2x128xf32> to vector<2x128xf32>
    %49 = vector.broadcast %46 : f32 to vector<2x128xf32>
    %50 = arith.mulf %49, %48 : vector<2x128xf32>
    %51 = arith.addf %45, %50 : vector<2x128xf32>
    %c6 = arith.constant 6 : index
    %52 = memref.load %arg3[%c6] : memref<16xf32, #tpu.memory_space<smem>>
    %53 = vector.extract_strided_slice %14 {offsets = [2, 0, 0], sizes = [1, 2, 128], strides = [1, 1, 1]} : vector<4x2x128xf32> to vector<1x2x128xf32>
    %54 = vector.shape_cast %53 : vector<1x2x128xf32> to vector<2x128xf32>
    %55 = vector.broadcast %52 : f32 to vector<2x128xf32>
    %56 = arith.mulf %55, %54 : vector<2x128xf32>
    %57 = arith.addf %51, %56 : vector<2x128xf32>
    %c7 = arith.constant 7 : index
    %58 = memref.load %arg3[%c7] : memref<16xf32, #tpu.memory_space<smem>>
    %59 = vector.extract_strided_slice %14 {offsets = [3, 0, 0], sizes = [1, 2, 128], strides = [1, 1, 1]} : vector<4x2x128xf32> to vector<1x2x128xf32>
    %60 = vector.shape_cast %59 : vector<1x2x128xf32> to vector<2x128xf32>
    %61 = vector.broadcast %58 : f32 to vector<2x128xf32>
    %62 = arith.mulf %61, %60 : vector<2x128xf32>
    %63 = arith.addf %57, %62 : vector<2x128xf32>
    %c0_18 = arith.constant 0 : index
    %c1_19 = arith.constant 1 : index
    %c0_20 = arith.constant 0 : index
    %c0_21 = arith.constant 0 : index
    %64 = vector.load %arg7[%c0_18, %c1_19, %c0_20, %c0_21] : memref<1x4x2x128xf32, #tpu.memory_space<vmem>>, vector<1x1x2x128xf32>
    %65 = vector.shape_cast %64 : vector<1x1x2x128xf32> to vector<2x128xf32>
    %66 = vector.shape_cast %63 : vector<2x128xf32> to vector<1x1x2x128xf32>
    tpu.vector_store %arg7[%c0_18, %c1_19, %c0_20, %c0_21], %66 {strides = array<i32>} : memref<1x4x2x128xf32, #tpu.memory_space<vmem>>, vector<1x1x2x128xf32>,
    %c8 = arith.constant 8 : index
    %67 = memref.load %arg3[%c8] : memref<16xf32, #tpu.memory_space<smem>>
    %68 = vector.extract_strided_slice %14 {offsets = [0, 0, 0], sizes = [1, 2, 128], strides = [1, 1, 1]} : vector<4x2x128xf32> to vector<1x2x128xf32>
    %69 = vector.shape_cast %68 : vector<1x2x128xf32> to vector<2x128xf32>
    %70 = vector.broadcast %67 : f32 to vector<2x128xf32>
    %71 = arith.mulf %70, %69 : vector<2x128xf32>
    %c9 = arith.constant 9 : index
    %72 = memref.load %arg3[%c9] : memref<16xf32, #tpu.memory_space<smem>>
    %73 = vector.extract_strided_slice %14 {offsets = [1, 0, 0], sizes = [1, 2, 128], strides = [1, 1, 1]} : vector<4x2x128xf32> to vector<1x2x128xf32>
    %74 = vector.shape_cast %73 : vector<1x2x128xf32> to vector<2x128xf32>
    %75 = vector.broadcast %72 : f32 to vector<2x128xf32>
    %76 = arith.mulf %75, %74 : vector<2x128xf32>
    %77 = arith.addf %71, %76 : vector<2x128xf32>
    %c10 = arith.constant 10 : index
    %78 = memref.load %arg3[%c10] : memref<16xf32, #tpu.memory_space<smem>>
    %79 = vector.extract_strided_slice %14 {offsets = [2, 0, 0], sizes = [1, 2, 128], strides = [1, 1, 1]} : vector<4x2x128xf32> to vector<1x2x128xf32>
    %80 = vector.shape_cast %79 : vector<1x2x128xf32> to vector<2x128xf32>
    %81 = vector.broadcast %78 : f32 to vector<2x128xf32>
    %82 = arith.mulf %81, %80 : vector<2x128xf32>
    %83 = arith.addf %77, %82 : vector<2x128xf32>
    %c11 = arith.constant 11 : index
    %84 = memref.load %arg3[%c11] : memref<16xf32, #tpu.memory_space<smem>>
    %85 = vector.extract_strided_slice %14 {offsets = [3, 0, 0], sizes = [1, 2, 128], strides = [1, 1, 1]} : vector<4x2x128xf32> to vector<1x2x128xf32>
    %86 = vector.shape_cast %85 : vector<1x2x128xf32> to vector<2x128xf32>
    %87 = vector.broadcast %84 : f32 to vector<2x128xf32>
    %88 = arith.mulf %87, %86 : vector<2x128xf32>
    %89 = arith.addf %83, %88 : vector<2x128xf32>
    %c0_22 = arith.constant 0 : index
    %c2_23 = arith.constant 2 : index
    %c0_24 = arith.constant 0 : index
    %c0_25 = arith.constant 0 : index
    %90 = vector.load %arg7[%c0_22, %c2_23, %c0_24, %c0_25] : memref<1x4x2x128xf32, #tpu.memory_space<vmem>>, vector<1x1x2x128xf32>
    %91 = vector.shape_cast %90 : vector<1x1x2x128xf32> to vector<2x128xf32>
    %92 = vector.shape_cast %89 : vector<2x128xf32> to vector<1x1x2x128xf32>
    tpu.vector_store %arg7[%c0_22, %c2_23, %c0_24, %c0_25], %92 {strides = array<i32>} : memref<1x4x2x128xf32, #tpu.memory_space<vmem>>, vector<1x1x2x128xf32>,
    %c12 = arith.constant 12 : index
    %93 = memref.load %arg3[%c12] : memref<16xf32, #tpu.memory_space<smem>>
    %94 = vector.extract_strided_slice %14 {offsets = [0, 0, 0], sizes = [1, 2, 128], strides = [1, 1, 1]} : vector<4x2x128xf32> to vector<1x2x128xf32>
    %95 = vector.shape_cast %94 : vector<1x2x128xf32> to vector<2x128xf32>
    %96 = vector.broadcast %93 : f32 to vector<2x128xf32>
    %97 = arith.mulf %96, %95 : vector<2x128xf32>
    %c13 = arith.constant 13 : index
    %98 = memref.load %arg3[%c13] : memref<16xf32, #tpu.memory_space<smem>>
    %99 = vector.extract_strided_slice %14 {offsets = [1, 0, 0], sizes = [1, 2, 128], strides = [1, 1, 1]} : vector<4x2x128xf32> to vector<1x2x128xf32>
    %100 = vector.shape_cast %99 : vector<1x2x128xf32> to vector<2x128xf32>
    %101 = vector.broadcast %98 : f32 to vector<2x128xf32>
    %102 = arith.mulf %101, %100 : vector<2x128xf32>
    %103 = arith.addf %97, %102 : vector<2x128xf32>
    %c14 = arith.constant 14 : index
    %104 = memref.load %arg3[%c14] : memref<16xf32, #tpu.memory_space<smem>>
    %105 = vector.extract_strided_slice %14 {offsets = [2, 0, 0], sizes = [1, 2, 128], strides = [1, 1, 1]} : vector<4x2x128xf32> to vector<1x2x128xf32>
    %106 = vector.shape_cast %105 : vector<1x2x128xf32> to vector<2x128xf32>
    %107 = vector.broadcast %104 : f32 to vector<2x128xf32>
    %108 = arith.mulf %107, %106 : vector<2x128xf32>
    %109 = arith.addf %103, %108 : vector<2x128xf32>
    %c15 = arith.constant 15 : index
    %110 = memref.load %arg3[%c15] : memref<16xf32, #tpu.memory_space<smem>>
    %111 = vector.extract_strided_slice %14 {offsets = [3, 0, 0], sizes = [1, 2, 128], strides = [1, 1, 1]} : vector<4x2x128xf32> to vector<1x2x128xf32>
    %112 = vector.shape_cast %111 : vector<1x2x128xf32> to vector<2x128xf32>
    %113 = vector.broadcast %110 : f32 to vector<2x128xf32>
    %114 = arith.mulf %113, %112 : vector<2x128xf32>
    %115 = arith.addf %109, %114 : vector<2x128xf32>
    %c0_26 = arith.constant 0 : index
    %c3_27 = arith.constant 3 : index
    %c0_28 = arith.constant 0 : index
    %c0_29 = arith.constant 0 : index
    %116 = vector.load %arg7[%c0_26, %c3_27, %c0_28, %c0_29] : memref<1x4x2x128xf32, #tpu.memory_space<vmem>>, vector<1x1x2x128xf32>
    %117 = vector.shape_cast %116 : vector<1x1x2x128xf32> to vector<2x128xf32>
    %118 = vector.shape_cast %115 : vector<2x128xf32> to vector<1x1x2x128xf32>
    tpu.vector_store %arg7[%c0_26, %c3_27, %c0_28, %c0_29], %118 {strides = array<i32>} : memref<1x4x2x128xf32, #tpu.memory_space<vmem>>, vector<1x1x2x128xf32>,
    return
  }
  func.func @transform_0(%arg0: i32, %arg1: i32) -> i32 {
    %c0_i32 = arith.constant 0 : i32
    %c0_i32_0 = arith.constant 0 : i32
    return %c0_i32 : i32
  }
  func.func @transform_1(%arg0: i32, %arg1: i32) -> i32 {
    %c0_i32 = arith.constant 0 : i32
    %c0_i32_0 = arith.constant 0 : i32
    return %c0_i32 : i32
  }
  func.func @transform_2(%arg0: i32, %arg1: i32) -> (i32, i32, i32, i32) {
    %c0_i32 = arith.constant 0 : i32
    %c0_i32_0 = arith.constant 0 : i32
    %c0_i32_1 = arith.constant 0 : i32
    return %arg0, %c0_i32, %arg1, %c0_i32_0 : i32, i32, i32, i32
  }
  func.func @transform_3(%arg0: i32, %arg1: i32) -> (i32, i32, i32, i32) {
    %c0_i32 = arith.constant 0 : i32
    %c0_i32_0 = arith.constant 0 : i32
    %c0_i32_1 = arith.constant 0 : i32
    return %arg0, %c0_i32, %arg1, %c0_i32_0 : i32, i32, i32, i32
  }
  func.func @transform_4(%arg0: i32, %arg1: i32) -> (i32, i32, i32, i32) {
    %c0_i32 = arith.constant 0 : i32
    %c0_i32_0 = arith.constant 0 : i32
    %c0_i32_1 = arith.constant 0 : i32
    return %arg0, %c0_i32, %arg1, %c0_i32_0 : i32, i32, i32, i32
  }
  func.func @transform_5(%arg0: i32, %arg1: i32) -> (i32, i32, i32, i32) {
    %c0_i32 = arith.constant 0 : i32
    %c0_i32_0 = arith.constant 0 : i32
    %c0_i32_1 = arith.constant 0 : i32
    return %arg0, %c0_i32, %arg1, %c0_i32_0 : i32, i32, i32, i32
  }
}

</mosaic_0001>

<llo_original>
// kernel: tpu_custom_call.1
$region0: #{tpu_custom_call.1}
  #allocation0 [shape = 'u32[]', space=smem, size = 0x4, offset = 0x4, fixed_abs, tag = 'smem constant byte address 0x4 - core index']
  #allocation1 [shape = 'u32[72,128]{1,0:T(1,128)}', space=vmem, size = 0x9000, scoped, tag = 'internal scratch']
  %s0 = inlined_call_operand.hbm [shape: f32[2], index: 0, kind: input, shape index: {}]
  %s1 = inlined_call_operand.hbm [shape: f32[16], index: 1, kind: input, shape index: {}]
  %s2 = inlined_call_operand.hbm [shape: f32[2,4,2,128], index: 2, kind: input, shape index: {}]
  %s3 = inlined_call_operand.hbm [shape: f32[2,4,2,128], index: 3, kind: input, shape index: {}]
  %s4 = inlined_call_operand.hbm [shape: f32[2,4,2,128], index: 4, kind: input, shape index: {}]
  %s5 = inlined_call_operand.hbm [shape: f32[2,4,2,128], index: 5, kind: output, shape index: {}]
  %s6 = sld [smem:[#allocation0]]
  $region73: #{tpu_custom_call.1} parent=0
    _
  %s8 = ssub.s32 1, %s6
  %s9 = scalar_select 0, %s8, %s6
  $region1: #{tpu_custom_call.1} parent=0
    #allocation2 [shape = 'u8[512]{0}', space=smem, size = 0x200, scoped, tag = 'input window, operand 0, single buffered']
    #allocation3 [shape = 's32[2]{0}', space=sflag, size = 0x8, scoped, tag = 'scoped memory for tpu_custom_call.1']
    #allocation4 [shape = 's32[2]{0}', space=sflag, size = 0x8, scoped, tag = 'scoped memory for tpu_custom_call.1']
    #allocation5 [shape = 's32[2]{0}', space=sflag, size = 0x8, scoped, tag = 'scoped memory for tpu_custom_call.1']
    #allocation6 [shape = 'u8[512]{0}', space=smem, size = 0x200, scoped, tag = 'input window, operand 1, single buffered']
    #allocation7 [shape = 's32[1]{0}', space=sflag, size = 0x4, scoped, tag = 'scoped memory for tpu_custom_call.1']
    #allocation8 [shape = 'u8[8192]{0}', space=vmem, size = 0x2000, scoped, tag = 'input window, operand 2']
    #allocation9 [shape = 'u8[8192]{0}', space=vmem, size = 0x2000, scoped, tag = 'input window, operand 3']
    #allocation10 [shape = 's32[2]{0}', space=sflag, size = 0x8, scoped, tag = 'scoped memory for tpu_custom_call.1']
    #allocation11 [shape = 'u8[8192]{0}', space=vmem, size = 0x2000, scoped, tag = 'input window, operand 4']
    #allocation12 [shape = 'u8[8192]{0}', space=vmem, size = 0x2000, scoped, tag = 'output window, operand 0']
    %10 = vsyncpa [#allocation5], 0
    %11 = vsyncpa [#allocation7], 0
    %12 = vsyncpa [#allocation3], 0
    %s13 = scalar_lea.sflag [#allocation3], 1
    %14 = vsyncpa %s13, 0
    %15 = vsyncpa [#allocation10], 0
    %s16 = scalar_lea.sflag [#allocation10], 1
    %17 = vsyncpa %s16, 0
    %18 = vsyncpa [#allocation4], 0
    %s19 = scalar_lea.sflag [#allocation4], 1
    %20 = vsyncpa %s19, 0
    loop: start=0, step=1, limit=4
    $region2: #{tpu_custom_call.1} parent=1 // loop_pre_header
      _
    $region3: #{tpu_custom_call.1} parent=1 // loop_header
      %s22 = sphi 0, %s26
      %p23 = scmp.ge.s32.totalorder %s22, 4
      %s29 = sphi 0, %s41
      %s30 = sphi 0, %s37
      %s31 = sphi 0, %s29
      %s32 = sphi 0, %s30
      %s33 = sphi 0, %s31
      %s34 = sphi 0, %s32
      %s42 = sphi 0, %s42
      %s44 = sphi 0, %s42
      %s45 = sphi 0, %s44
      %s59 = sphi 0, %s45
      %s63 = sphi 0, %s63
      %s65 = sphi 0, %s63
      %s66 = sphi 0, %s65
      %s80 = sphi 0, %s66
      %s88 = sphi 0, %s90
      %s91 = sphi 0, %s88
      %s92 = sphi 0, %s91
      %s108 = sphi 0, %s92
      %s116 = sphi 0, %s118
      %s119 = sphi 0, %s116
      %s120 = sphi 0, %s119
      %s136 = sphi 0, %s120
      %s144 = sphi 0, %s146
      %s147 = sphi 0, %s144
      %s148 = sphi 0, %s147
      %s164 = sphi 0, %s148
      %s172 = sphi 0, %s174
      %s175 = sphi 0, %s172
      %s176 = sphi 0, %s175
      %s192 = sphi 0, %s176
    $region4: #{tpu_custom_call.1} parent=1 // loop_header_branch
      %25 = sbr.rel (%p23) target = $region8
    $region5: #{tpu_custom_call.1} parent=1 // loop_body
      %s27 = ssub.s32 %s22, 1
      %s28 = ssub.s32 %s22, 2
      %s35 = sadd.s32 1, %s30
      %p36 = scmp.ge.s32.totalorder %s35, 1
      %s37 = scalar_select %p36, 0, %s35
      %s38 = sadd.s32 1, %s29
      %s39 = scalar_select %p36, %s38, %s29
      %p40 = scmp.ge.s32.totalorder %s39, 2
      %s41 = scalar_select %p40, 0, %s39
      %s43 = sadd.s32 %s42, 1
      %p46 = scmp.eq.s32.totalorder %s22, 1
      %p47 = scmp.ne.s32.totalorder %s42, %s44
      %p48 = scmp.eq.s32.totalorder %s22, 0
      %p49 = por %p47, %p48
      %p50 = scmp.ne.s32.totalorder %s42, %s44
      %p51 = scmp.eq.s32.totalorder %s27, 1
      %p52 = por %p50, %p51
      %p53 = scmp.ne.s32.totalorder %s44, %s45
      %p54 = scmp.eq.s32.totalorder %s27, 0
      %p55 = por %p53, %p54
      %p56 = scmp.ne.s32.totalorder %s44, %s45
      %p57 = scmp.eq.s32.totalorder %s28, 1
      %p58 = por %p56, %p57
      %p60 = scmp.ne.s32.totalorder %s45, %s59
      %p61 = scmp.eq.s32.totalorder %s28, 0
      %p62 = por %p60, %p61
      %s64 = sadd.s32 %s63, 1
      %p67 = scmp.eq.s32.totalorder %s22, 1
      %p68 = scmp.ne.s32.totalorder %s63, %s65
      %p69 = scmp.eq.s32.totalorder %s22, 0
      %p70 = por %p68, %p69
      %p71 = scmp.ne.s32.totalorder %s63, %s65
      %p72 = scmp.eq.s32.totalorder %s27, 1
      %p73 = por %p71, %p72
      %p74 = scmp.ne.s32.totalorder %s65, %s66
      %p75 = scmp.eq.s32.totalorder %s27, 0
      %p76 = por %p74, %p75
      %p77 = scmp.ne.s32.totalorder %s65, %s66
      %p78 = scmp.eq.s32.totalorder %s28, 1
      %p79 = por %p77, %p78
      %p81 = scmp.ne.s32.totalorder %s66, %s80
      %p82 = scmp.eq.s32.totalorder %s28, 0
      %p83 = por %p81, %p82
      %s84 = ssub.s32 %s29, %s41
      %s85 = ssub.s32 %s30, %s37
      %s86 = sor.u32 %s84, %s85
      %p87 = scmp.eq.s32.totalorder %s86, 0
      %s89 = sadd.s32 %s88, 1
      %s90 = scalar_select %p87, %s88, %s89
      %p93 = pneg %p87
      %p94 = scmp.eq.s32.totalorder %s22, 1
      %p95 = por %p93, %p94
      %p96 = scmp.ne.s32.totalorder %s88, %s91
      %p97 = scmp.eq.s32.totalorder %s22, 0
      %p98 = por %p96, %p97
      %p99 = scmp.ne.s32.totalorder %s88, %s91
      %p100 = scmp.eq.s32.totalorder %s27, 1
      %p101 = por %p99, %p100
      %p102 = scmp.ne.s32.totalorder %s91, %s92
      %p103 = scmp.eq.s32.totalorder %s27, 0
      %p104 = por %p102, %p103
      %p105 = scmp.ne.s32.totalorder %s91, %s92
      %p106 = scmp.eq.s32.totalorder %s28, 1
      %p107 = por %p105, %p106
      %p109 = scmp.ne.s32.totalorder %s92, %s108
      %p110 = scmp.eq.s32.totalorder %s28, 0
      %p111 = por %p109, %p110
      %s112 = ssub.s32 %s29, %s41
      %s113 = ssub.s32 %s30, %s37
      %s114 = sor.u32 %s112, %s113
      %p115 = scmp.eq.s32.totalorder %s114, 0
      %s117 = sadd.s32 %s116, 1
      %s118 = scalar_select %p115, %s116, %s117
      %p121 = pneg %p115
      %p122 = scmp.eq.s32.totalorder %s22, 1
      %p123 = por %p121, %p122
      %p124 = scmp.ne.s32.totalorder %s116, %s119
      %p125 = scmp.eq.s32.totalorder %s22, 0
      %p126 = por %p124, %p125
      %p127 = scmp.ne.s32.totalorder %s116, %s119
      %p128 = scmp.eq.s32.totalorder %s27, 1
      %p129 = por %p127, %p128
      %p130 = scmp.ne.s32.totalorder %s119, %s120
      %p131 = scmp.eq.s32.totalorder %s27, 0
      %p132 = por %p130, %p131
      %p133 = scmp.ne.s32.totalorder %s119, %s120
      %p134 = scmp.eq.s32.totalorder %s28, 1
      %p135 = por %p133, %p134
      %p137 = scmp.ne.s32.totalorder %s120, %s136
      %p138 = scmp.eq.s32.totalorder %s28, 0
      %p139 = por %p137, %p138
      %s140 = ssub.s32 %s29, %s41
      %s141 = ssub.s32 %s30, %s37
      %s142 = sor.u32 %s140, %s141
      %p143 = scmp.eq.s32.totalorder %s142, 0
      %s145 = sadd.s32 %s144, 1
      %s146 = scalar_select %p143, %s144, %s145
      %p149 = pneg %p143
      %p150 = scmp.eq.s32.totalorder %s22, 1
      %p151 = por %p149, %p150
      %p152 = scmp.ne.s32.totalorder %s144, %s147
      %p153 = scmp.eq.s32.totalorder %s22, 0
      %p154 = por %p152, %p153
      %p155 = scmp.ne.s32.totalorder %s144, %s147
      %p156 = scmp.eq.s32.totalorder %s27, 1
      %p157 = por %p155, %p156
      %p158 = scmp.ne.s32.totalorder %s147, %s148
      %p159 = scmp.eq.s32.totalorder %s27, 0
      %p160 = por %p158, %p159
      %p161 = scmp.ne.s32.totalorder %s147, %s148
      %p162 = scmp.eq.s32.totalorder %s28, 1
      %p163 = por %p161, %p162
      %p165 = scmp.ne.s32.totalorder %s148, %s164
      %p166 = scmp.eq.s32.totalorder %s28, 0
      %p167 = por %p165, %p166
      %s168 = ssub.s32 %s29, %s41
      %s169 = ssub.s32 %s30, %s37
      %s170 = sor.u32 %s168, %s169
      %p171 = scmp.eq.s32.totalorder %s170, 0
      %s173 = sadd.s32 %s172, 1
      %s174 = scalar_select %p171, %s172, %s173
      %p177 = pneg %p171
      %p178 = scmp.eq.s32.totalorder %s22, 1
      %p179 = por %p177, %p178
      %p180 = scmp.ne.s32.totalorder %s172, %s175
      %p181 = scmp.eq.s32.totalorder %s22, 0
      %p182 = por %p180, %p181
      %p183 = scmp.ne.s32.totalorder %s172, %s175
      %p184 = scmp.eq.s32.totalorder %s27, 1
      %p185 = por %p183, %p184
      %p186 = scmp.ne.s32.totalorder %s175, %s176
      %p187 = scmp.eq.s32.totalorder %s27, 0
      %p188 = por %p186, %p187
      %p189 = scmp.ne.s32.totalorder %s175, %s176
      %p190 = scmp.eq.s32.totalorder %s28, 1
      %p191 = por %p189, %p190
      %p193 = scmp.ne.s32.totalorder %s176, %s192
      %p194 = scmp.eq.s32.totalorder %s28, 0
      %p195 = por %p193, %p194
      %p196 = scmp.le.s32.totalorder 1, %s22
      %p197 = scmp.lt.s32.totalorder %s22, 3
      %p198 = pnand %p196, %p197
      %p199 = pneg %p198
      // Predicated region
      $region9: #{tpu_custom_call.1} parent=5 // pred_check
        _
      $region10: #{tpu_custom_call.1} parent=5 // pred_check_branch
        %201 = sbr.rel (%p198) target = $region12
      $region11: #{tpu_custom_call.1} parent=5 // pred_region
        %s202 = ssub.s32 %s22, 1
        // Predicated region
        $region13: #{tpu_custom_call.1} parent=11 // pred_check
          %p203 = pneg %p55
        $region14: #{tpu_custom_call.1} parent=11 // pred_check_branch
          %205 = sbr.rel (%p203) target = $region16
        $region15: #{tpu_custom_call.1} parent=11 // pred_region
          %207 = vsyncadd [#allocation5], 0
          %s209 = sshll.u32 %s0, 4
          %s210 = int_to_ptr.hbm [resolvable:$true] %s209
          %212 = dma.hbm_to_smem %s210, 16, [#allocation2], [#allocation5]
        $region16: #{tpu_custom_call.1} parent=11 // pred_fallthru
          _
        // Predicated region
        $region17: #{tpu_custom_call.1} parent=11 // pred_check
          %p213 = pneg %p76
        $region18: #{tpu_custom_call.1} parent=11 // pred_check_branch
          %215 = sbr.rel (%p213) target = $region20
        $region19: #{tpu_custom_call.1} parent=11 // pred_region
          %217 = vsyncadd [#allocation7], 0
          %s219 = sshll.u32 %s1, 4
          %s220 = int_to_ptr.hbm [resolvable:$true] %s219
          %222 = dma.hbm_to_smem %s220, 16, [#allocation6], [#allocation7]
        $region20: #{tpu_custom_call.1} parent=11 // pred_fallthru
          _
      $region12: #{tpu_custom_call.1} parent=5 // pred_fallthru
        _
      %p223 = scmp.lt.s32.totalorder %s22, 2
      // Predicated region
      $region21: #{tpu_custom_call.1} parent=5 // pred_check
        %p224 = pneg %p223
      $region22: #{tpu_custom_call.1} parent=5 // pred_check_branch
        %226 = sbr.rel (%p224) target = $region24
      $region23: #{tpu_custom_call.1} parent=5 // pred_region
        // Predicated region
        $region25: #{tpu_custom_call.1} parent=23 // pred_check
          %p227 = pneg %p98
        $region26: #{tpu_custom_call.1} parent=23 // pred_check_branch
          %229 = sbr.rel (%p227) target = $region28
        $region27: #{tpu_custom_call.1} parent=23 // pred_region
          %s230 = sand.u32 %s88, 1
          %s231 = scalar_lea.sflag [#allocation3], %s230
          %s232 = sand.u32 %s88, 1
          %s233 = smul.addr %s232, 8
          %s234 = scalar_lea.vmem [#allocation8], %s233
          %236 = vsyncadd %s231, 0
          %s237 = smul.addr %s29, 4
          %s238 = sadd.s32 %s30, %s237
          %s239 = smul.addr %s238, 2
          %s240 = scalar_lea.hbm %s2, %s239
          %s241 = sshll.u32 %s240, 4
          %s242 = int_to_ptr.hbm [resolvable:$true] %s241
          %s243 = sshll.u32 %s234, 4
          %s244 = int_to_ptr.vmem [resolvable:$true] %s243
          %249 = dma.hbm_to_vmem [thread:$0]  %s242, 128, %s244, %s231, 32, 32, 2
        $region28: #{tpu_custom_call.1} parent=23 // pred_fallthru
          _
        // Predicated region
        $region29: #{tpu_custom_call.1} parent=23 // pred_check
          %p250 = pneg %p126
        $region30: #{tpu_custom_call.1} parent=23 // pred_check_branch
          %252 = sbr.rel (%p250) target = $region32
        $region31: #{tpu_custom_call.1} parent=23 // pred_region
          %s253 = sand.u32 %s22, 1
          %s254 = scalar_lea.sflag [#allocation10], %s253
          %s255 = sand.u32 %s116, 1
          %s256 = smul.addr %s255, 8
          %s257 = scalar_lea.vmem [#allocation9], %s256
          %259 = vsyncadd %s254, 0
          %s260 = smul.addr %s29, 4
          %s261 = sadd.s32 %s30, %s260
          %s262 = smul.addr %s261, 2
          %s263 = scalar_lea.hbm %s3, %s262
          %s264 = sshll.u32 %s263, 4
          %s265 = int_to_ptr.hbm [resolvable:$true] %s264
          %s266 = sshll.u32 %s257, 4
          %s267 = int_to_ptr.vmem [resolvable:$true] %s266
          %272 = dma.hbm_to_vmem [thread:$0]  %s265, 128, %s267, %s254, 32, 32, 2
        $region32: #{tpu_custom_call.1} parent=23 // pred_fallthru
          _
        // Predicated region
        $region33: #{tpu_custom_call.1} parent=23 // pred_check
          %p273 = pneg %p154
        $region34: #{tpu_custom_call.1} parent=23 // pred_check_branch
          %275 = sbr.rel (%p273) target = $region36
        $region35: #{tpu_custom_call.1} parent=23 // pred_region
          %s276 = sand.u32 %s22, 1
          %s277 = scalar_lea.sflag [#allocation10], %s276
          %s278 = sand.u32 %s144, 1
          %s279 = smul.addr %s278, 8
          %s280 = scalar_lea.vmem [#allocation11], %s279
          %282 = vsyncadd %s277, 0
          %s283 = smul.addr %s29, 4
          %s284 = sadd.s32 %s30, %s283
          %s285 = smul.addr %s284, 2
          %s286 = scalar_lea.hbm %s4, %s285
          %s287 = sshll.u32 %s286, 4
          %s288 = int_to_ptr.hbm [resolvable:$true] %s287
          %s289 = sshll.u32 %s280, 4
          %s290 = int_to_ptr.vmem [resolvable:$true] %s289
          %295 = dma.hbm_to_vmem [thread:$0]  %s288, 128, %s290, %s277, 32, 32, 2
        $region36: #{tpu_custom_call.1} parent=23 // pred_fallthru
          _
      $region24: #{tpu_custom_call.1} parent=5 // pred_fallthru
        _
      %p296 = scmp.le.s32.totalorder 1, %s22
      %p297 = scmp.lt.s32.totalorder %s22, 3
      %p298 = pnand %p296, %p297
      %p299 = pneg %p298
      // Predicated region
      $region37: #{tpu_custom_call.1} parent=5 // pred_check
        _
      $region38: #{tpu_custom_call.1} parent=5 // pred_check_branch
        %301 = sbr.rel (%p298) target = $region40
      $region39: #{tpu_custom_call.1} parent=5 // pred_region
        %s302 = ssub.s32 %s22, 1
        // Predicated region
        $region41: #{tpu_custom_call.1} parent=39 // pred_check
          %p303 = pneg %p55
        $region42: #{tpu_custom_call.1} parent=39 // pred_check_branch
          %305 = sbr.rel (%p303) target = $region44
        $region43: #{tpu_custom_call.1} parent=39 // pred_region
          %307 = dma.done [#allocation5], 16
        $region44: #{tpu_custom_call.1} parent=39 // pred_fallthru
          _
        // Predicated region
        $region45: #{tpu_custom_call.1} parent=39 // pred_check
          %p308 = pneg %p76
        $region46: #{tpu_custom_call.1} parent=39 // pred_check_branch
          %310 = sbr.rel (%p308) target = $region48
        $region47: #{tpu_custom_call.1} parent=39 // pred_region
          %312 = dma.done [#allocation7], 16
        $region48: #{tpu_custom_call.1} parent=39 // pred_fallthru
          _
        %s313 = sand.u32 %s91, 1
        %s314 = scalar_lea.sflag [#allocation3], %s313
        %s315 = sand.u32 %s91, 1
        %s316 = smul.addr %s315, 8
        %s317 = scalar_lea.vmem [#allocation8], %s316
        // Predicated region
        $region49: #{tpu_custom_call.1} parent=39 // pred_check
          %p318 = pneg %p104
        $region50: #{tpu_custom_call.1} parent=39 // pred_check_branch
          %320 = sbr.rel (%p318) target = $region52
        $region51: #{tpu_custom_call.1} parent=39 // pred_region
          %322 = dma.done %s314, 128
        $region52: #{tpu_custom_call.1} parent=39 // pred_fallthru
          _
        %s323 = sand.u32 %s27, 1
        %s324 = scalar_lea.sflag [#allocation10], %s323
        %s325 = sand.u32 %s119, 1
        %s326 = smul.addr %s325, 8
        %s327 = scalar_lea.vmem [#allocation9], %s326
        // Predicated region
        $region53: #{tpu_custom_call.1} parent=39 // pred_check
          %p328 = pneg %p132
        $region54: #{tpu_custom_call.1} parent=39 // pred_check_branch
          %330 = sbr.rel (%p328) target = $region56
        $region55: #{tpu_custom_call.1} parent=39 // pred_region
          %332 = dma.done %s324, 128
        $region56: #{tpu_custom_call.1} parent=39 // pred_fallthru
          _
        %s333 = sand.u32 %s27, 1
        %s334 = scalar_lea.sflag [#allocation10], %s333
        %s335 = sand.u32 %s147, 1
        %s336 = smul.addr %s335, 8
        %s337 = scalar_lea.vmem [#allocation11], %s336
        // Predicated region
        $region57: #{tpu_custom_call.1} parent=39 // pred_check
          %p338 = pneg %p160
        $region58: #{tpu_custom_call.1} parent=39 // pred_check_branch
          %340 = sbr.rel (%p338) target = $region60
        $region59: #{tpu_custom_call.1} parent=39 // pred_region
          %342 = dma.done %s334, 128
        $region60: #{tpu_custom_call.1} parent=39 // pred_fallthru
          _
        %343 = sfence
        %p344 = pneg %p55
        %p345 = pneg %p52
        %p346 = pneg %p76
        %p347 = pneg %p73
        %s348 = sand.u32 %s91, 1
        %s349 = scalar_lea.sflag [#allocation3], %s348
        %s350 = sand.u32 %s91, 1
        %s351 = smul.addr %s350, 8
        %s352 = scalar_lea.vmem [#allocation8], %s351
        %p353 = pneg %p104
        %p354 = pneg %p101
        %s355 = sand.u32 %s27, 1
        %s356 = scalar_lea.sflag [#allocation10], %s355
        %s357 = sand.u32 %s119, 1
        %s358 = smul.addr %s357, 8
        %s359 = scalar_lea.vmem [#allocation9], %s358
        %p360 = pneg %p132
        %p361 = pneg %p129
        %s362 = sand.u32 %s27, 1
        %s363 = scalar_lea.sflag [#allocation10], %s362
        %s364 = sand.u32 %s147, 1
        %s365 = smul.addr %s364, 8
        %s366 = scalar_lea.vmem [#allocation11], %s365
        %p367 = pneg %p160
        %p368 = pneg %p157
        %p369 = pneg %p188
        %p370 = pneg %p185
        %s371 = sand.u32 %s175, 1
        %s372 = scalar_lea.sflag [#allocation4], %s371
        %s373 = sand.u32 %s175, 1
        %s374 = smul.addr %s373, 8
        %s375 = scalar_lea.vmem [#allocation12], %s374
        %s376 = sld [smem:[#allocation2]]
        %s377 = sld [smem:[#allocation2 + $0x1]]
        %v378 = vld [vmem:[%s317] sm:$0x3]
        %v379 = vld [vmem:[%s317 + $0x2] sm:$0x3]
        %v380 = vld [vmem:[%s317 + $0x4] sm:$0x3]
        %v381 = vld [vmem:[%s317 + $0x6] sm:$0x3]
        %v382 = vld [vmem:[%s327] sm:$0x3]
        %v383 = vld [vmem:[%s327 + $0x2] sm:$0x3]
        %v384 = vld [vmem:[%s327 + $0x4] sm:$0x3]
        %v385 = vld [vmem:[%s327 + $0x6] sm:$0x3]
        %v386 = vld [vmem:[%s337] sm:$0x3]
        %v387 = vld [vmem:[%s337 + $0x2] sm:$0x3]
        %v388 = vld [vmem:[%s337 + $0x4] sm:$0x3]
        %v389 = vld [vmem:[%s337 + $0x6] sm:$0x3]
        %v390 = vsub.f32 %v382, %v386
        %v391 = vsub.f32 %v383, %v387
        %v392 = vsub.f32 %v384, %v388
        %v393 = vsub.f32 %v385, %v389
        %v394 = vstv %s376
        %v395 = vmul.f32 %v394, %v390
        %v396 = vmul.f32 %v394, %v391
        %v397 = vmul.f32 %v394, %v392
        %v398 = vmul.f32 %v394, %v393
        %v399 = vsub.f32 %v378, %v386
        %v400 = vsub.f32 %v379, %v387
        %v401 = vsub.f32 %v380, %v388
        %v402 = vsub.f32 %v381, %v389
        %v403 = vstv %s377
        %v404 = vmul.f32 %v403, %v399
        %v405 = vmul.f32 %v403, %v400
        %v406 = vmul.f32 %v403, %v401
        %v407 = vmul.f32 %v403, %v402
        %v408 = vadd.f32 %v395, %v404
        %v409 = vadd.f32 %v396, %v405
        %v410 = vadd.f32 %v397, %v406
        %v411 = vadd.f32 %v398, %v407
        %s412 = sld [smem:[#allocation6]]
        %v413 = vstv %s412
        %v414 = vmul.f32 %v413, %v408
        %s415 = sld [smem:[#allocation6 + $0x1]]
        %v416 = vstv %s415
        %v417 = vmul.f32 %v416, %v409
        %v418 = vadd.f32 %v414, %v417
        %s419 = sld [smem:[#allocation6 + $0x2]]
        %v420 = vstv %s419
        %v421 = vmul.f32 %v420, %v410
        %v422 = vadd.f32 %v418, %v421
        %s423 = sld [smem:[#allocation6 + $0x3]]
        %v424 = vstv %s423
        %v425 = vmul.f32 %v424, %v411
        %v426 = vadd.f32 %v422, %v425
        %427 = vst [vmem:[%s375] sm:$0x3] %v426
        %s428 = sld [smem:[#allocation6 + $0x4]]
        %v429 = vstv %s428
        %v430 = vmul.f32 %v429, %v408
        %s431 = sld [smem:[#allocation6 + $0x5]]
        %v432 = vstv %s431
        %v433 = vmul.f32 %v432, %v409
        %v434 = vadd.f32 %v430, %v433
        %s435 = sld [smem:[#allocation6 + $0x6]]
        %v436 = vstv %s435
        %v437 = vmul.f32 %v436, %v410
        %v438 = vadd.f32 %v434, %v437
        %s439 = sld [smem:[#allocation6 + $0x7]]
        %v440 = vstv %s439
        %v441 = vmul.f32 %v440, %v411
        %v442 = vadd.f32 %v438, %v441
        %s443 = scalar_lea.vmem %s375, 2 [#allocation12]
        %444 = vst [vmem:[%s443] sm:$0x3] %v442
        %s445 = sld [smem:[#allocation6 + $0x8]]
        %v446 = vstv %s445
        %v447 = vmul.f32 %v446, %v408
        %s448 = sld [smem:[#allocation6 + $0x9]]
        %v449 = vstv %s448
        %v450 = vmul.f32 %v449, %v409
        %v451 = vadd.f32 %v447, %v450
        %s452 = sld [smem:[#allocation6 + $0xa]]
        %v453 = vstv %s452
        %v454 = vmul.f32 %v453, %v410
        %v455 = vadd.f32 %v451, %v454
        %s456 = sld [smem:[#allocation6 + $0xb]]
        %v457 = vstv %s456
        %v458 = vmul.f32 %v457, %v411
        %v459 = vadd.f32 %v455, %v458
        %s460 = scalar_lea.vmem %s375, 4 [#allocation12]
        %461 = vst [vmem:[%s460] sm:$0x3] %v459
        %s462 = sld [smem:[#allocation6 + $0xc]]
        %v463 = vstv %s462
        %v464 = vmul.f32 %v463, %v408
        %s465 = sld [smem:[#allocation6 + $0xd]]
        %v466 = vstv %s465
        %v467 = vmul.f32 %v466, %v409
        %v468 = vadd.f32 %v464, %v467
        %s469 = sld [smem:[#allocation6 + $0xe]]
        %v470 = vstv %s469
        %v471 = vmul.f32 %v470, %v410
        %v472 = vadd.f32 %v468, %v471
        %s473 = sld [smem:[#allocation6 + $0xf]]
        %v474 = vstv %s473
        %v475 = vmul.f32 %v474, %v411
        %v476 = vadd.f32 %v472, %v475
        %s477 = scalar_lea.vmem %s375, 6 [#allocation12]
        %478 = vst [vmem:[%s477] sm:$0x3] %v476
        %s479 = sand.u32 %s175, 1
        %s480 = scalar_lea.sflag [#allocation4], %s479
        %s481 = sand.u32 %s175, 1
        %s482 = smul.addr %s481, 8
        %s483 = scalar_lea.vmem [#allocation12], %s482
        // Predicated region
        $region61: #{tpu_custom_call.1} parent=39 // pred_check
          %p484 = pneg %p185
        $region62: #{tpu_custom_call.1} parent=39 // pred_check_branch
          %486 = sbr.rel (%p484) target = $region64
        $region63: #{tpu_custom_call.1} parent=39 // pred_region
          %488 = vsyncadd %s480, 0
          %s489 = smul.addr %s31, 4
          %s490 = sadd.s32 %s32, %s489
          %s491 = smul.addr %s490, 2
          %s492 = scalar_lea.hbm %s5, %s491
          %s493 = sshll.u32 %s483, 4
          %s494 = int_to_ptr.vmem [resolvable:$true] %s493
          %s495 = sshll.u32 %s492, 4
          %s496 = int_to_ptr.hbm [resolvable:$true] %s495
          %501 = dma.vmem_to_hbm [thread:$0]  %s494, 128, %s496, %s480, 32, 32, 2
        $region64: #{tpu_custom_call.1} parent=39 // pred_fallthru
          _
      $region40: #{tpu_custom_call.1} parent=5 // pred_fallthru
        _
      %p502 = scmp.le.s32.totalorder 2, %s22
      // Predicated region
      $region65: #{tpu_custom_call.1} parent=5 // pred_check
        %p503 = pneg %p502
      $region66: #{tpu_custom_call.1} parent=5 // pred_check_branch
        %505 = sbr.rel (%p503) target = $region68
      $region67: #{tpu_custom_call.1} parent=5 // pred_region
        %s506 = ssub.s32 %s22, 2
        // Predicated region
        $region69: #{tpu_custom_call.1} parent=67 // pred_check
          %p507 = pneg %p191
        $region70: #{tpu_custom_call.1} parent=67 // pred_check_branch
          %509 = sbr.rel (%p507) target = $region72
        $region71: #{tpu_custom_call.1} parent=67 // pred_region
          %s510 = sand.u32 %s176, 1
          %s511 = scalar_lea.sflag [#allocation4], %s510
          %s512 = sand.u32 %s176, 1
          %s513 = smul.addr %s512, 8
          %s514 = scalar_lea.vmem [#allocation12], %s513
          %516 = dma.done %s511, 128
        $region72: #{tpu_custom_call.1} parent=67 // pred_fallthru
          _
      $region68: #{tpu_custom_call.1} parent=5 // pred_fallthru
        _
    $region6: #{tpu_custom_call.1} parent=1 // loop_footer
      %s26 = sadd.s32 1, %s22
    $region7: #{tpu_custom_call.1} parent=1 // loop_footer_branch
      %21 = sbr.rel target = $region3
    $region8: #{tpu_custom_call.1} parent=1 // loop_exit
      _
    %517 = vsyncpa [#allocation3], 1
    %s518 = scalar_lea.sflag [#allocation3], 1
    %519 = vsyncpa %s518, 1
    %520 = vsyncpa [#allocation10], 1
    %s521 = scalar_lea.sflag [#allocation10], 1
    %522 = vsyncpa %s521, 1
    %523 = vsyncpa [#allocation4], 1
    %s524 = scalar_lea.sflag [#allocation4], 1
    %525 = vsyncpa %s524, 1
    %526 = vsyncpa [#allocation5], 1
    %s527 = scalar_lea.sflag [#allocation5], 1
    %528 = vsyncpa %s527, 1
    %529 = vsyncpa [#allocation7], 1

</llo_original>
